<compile_context>
chip_gen: v7x
topology: tpu7x:2x2x1
jax: 0.10.0
libtpu: 0.0.40
codegen_flags: <defaults>
</compile_context>

<pallas_src>
import jax
import jax.numpy as jnp
import numpy as np
from jax.experimental import pallas as pl
from jax.experimental.pallas import tpu as pltpu


def _decoder_kernel(tok_ref,          # SMEM  (T,) int32   scalar-prefetched token ids
                    emb_ref,          # VMEM  (V, E)  f32  embedding table (resident)
                    h0c0_ref,         # VMEM  (2, H)  f32  initial hidden / cell state
                    wg_ref,           # VMEM  (E+H, 4H) bf16  fused [W_ih; W_hh] (pre-transposed)
                    bg_ref,           # VMEM  (1, 4H) f32  b_ih + b_hh
                    wo_ref,           # VMEM  (H, V)  bf16 output projection (pre-transposed)
                    bo_ref,           # VMEM  (1, V)  f32
                    logp_ref,         # OUT   (T, V)  f32  per-step log-probs (resident)
                    hc_ref):          # OUT   (2, H)  f32  final (h, c); also the recurrent carry
    t = pl.program_id(0)
    H = hc_ref.shape[-1]

    # Initialize the recurrent carry from (h0, c0) on the first step.
    @pl.when(t == 0)
    def _():
        hc_ref[...] = h0c0_ref[...]

    # In-kernel embedding gather + ReLU (F.relu(embedding(input))).
    tok = tok_ref[t]
    emb = emb_ref[pl.ds(tok, 1), :]                       # (1, E) dynamic row gather
    x = jnp.maximum(emb, 0.0)                             # f32

    h_prev = hc_ref[0:1, :]                               # (1, H) f32
    c_prev = hc_ref[1:2, :]                               # (1, H) f32

    # Fused gate matmul: [x, h] @ [W_ih; W_hh]  (bf16 operands, f32 accumulation).
    xh = jnp.concatenate([x, h_prev], axis=-1).astype(jnp.bfloat16)   # (1, E+H)
    gates = jnp.dot(xh, wg_ref[...],
                    preferred_element_type=jnp.float32) + bg_ref[...]  # (1, 4H) f32

    # PyTorch LSTM gate order: i, f, g, o — all gate math in f32.
    i_g = jax.nn.sigmoid(gates[:, 0 * H:1 * H])
    f_g = jax.nn.sigmoid(gates[:, 1 * H:2 * H])
    g_g = jnp.tanh(gates[:, 2 * H:3 * H])
    o_g = jax.nn.sigmoid(gates[:, 3 * H:4 * H])

    c_new = f_g * c_prev + i_g * g_g
    h_new = o_g * jnp.tanh(c_new)

    # Output projection + log_softmax(dim=1).
    logits = jnp.dot(h_new.astype(jnp.bfloat16), wo_ref[...],
                     preferred_element_type=jnp.float32) + bo_ref[...]  # (1, V) f32
    m = jnp.max(logits, axis=-1, keepdims=True)
    z = logits - m
    lse = jnp.log(jnp.sum(jnp.exp(z), axis=-1, keepdims=True))

    logp_ref[pl.ds(t, 1), :] = z - lse
    hc_ref[0:1, :] = h_new
    hc_ref[1:2, :] = c_new


@jax.jit
def _decode(tokens, emb_table, h0c0, w_gates, b_gates, w_out, b_out):
    """Run T recurrent decode steps inside a single pallas_call."""
    T = tokens.shape[0]
    V, E = emb_table.shape
    H = h0c0.shape[-1]

    grid_spec = pltpu.PrefetchScalarGridSpec(
        num_scalar_prefetch=1,          # tokens -> SMEM, passed to kernel + index_maps
        grid=(T,),
        in_specs=[
            pl.BlockSpec((V, E), lambda t, tok: (0, 0)),           # embedding table
            pl.BlockSpec((2, H), lambda t, tok: (0, 0)),           # (h0, c0)
            pl.BlockSpec((E + H, 4 * H), lambda t, tok: (0, 0)),   # fused gate weights
            pl.BlockSpec((1, 4 * H), lambda t, tok: (0, 0)),       # gate bias
            pl.BlockSpec((H, V), lambda t, tok: (0, 0)),           # output projection
            pl.BlockSpec((1, V), lambda t, tok: (0, 0)),           # output bias
        ],
        out_specs=(
            pl.BlockSpec((T, V), lambda t, tok: (0, 0)),           # per-step log-probs
            pl.BlockSpec((2, H), lambda t, tok: (0, 0)),           # final (h, c)
        ),
    )
    return pl.pallas_call(
        _decoder_kernel,
        grid_spec=grid_spec,
        out_shape=(jax.ShapeDtypeStruct((T, V), jnp.float32),
                   jax.ShapeDtypeStruct((2, H), jnp.float32)),
        compiler_params=pltpu.CompilerParams(
            dimension_semantics=("arbitrary",)),   # sequential recurrence over time
    )(tokens, emb_table, h0c0, w_gates, b_gates, w_out, b_out)


class BiLSTMDecoderPallas:
    """Deterministically initialized equivalent of the PyTorch BiLSTMDecoder."""

    def __init__(self, output_size, embedding_size, hidden_size, embedding_matrix,
                 key=jax.random.PRNGKey(0)):
        self.output_size = output_size
        self.embedding_size = embedding_size
        self.hidden_size = hidden_size

        k = jax.random.split(key, 6)
        bound = 1.0 / np.sqrt(hidden_size)

        # Embedding weight copied from the provided matrix (kept f32, gathered in-kernel).
        # TODO(synk): for realistic vocab sizes the embedding table and W_out should be
        # V-tiled (online logsumexp) instead of held whole in VMEM.
        self.embedding = jnp.asarray(embedding_matrix, dtype=jnp.float32)   # (V, E)

        # nn.LSTM(embedding_size, hidden_size) params, pre-transposed and fused:
        # rows [0:E] = W_ih^T, rows [E:E+H] = W_hh^T, stored bf16 for HBM/DMA savings.
        w_ih_t = jax.random.uniform(k[0], (embedding_size, 4 * hidden_size),
                                    jnp.float32, -bound, bound)
        w_hh_t = jax.random.uniform(k[1], (hidden_size, 4 * hidden_size),
                                    jnp.float32, -bound, bound)
        self.w_gates = jnp.concatenate([w_ih_t, w_hh_t], axis=0).astype(jnp.bfloat16)
        b_ih = jax.random.uniform(k[2], (4 * hidden_size,), jnp.float32, -bound, bound)
        b_hh = jax.random.uniform(k[3], (4 * hidden_size,), jnp.float32, -bound, bound)
        self.b_gates = (b_ih + b_hh).reshape(1, 4 * hidden_size)            # f32

        # nn.Linear(hidden_size, output_size), pre-transposed to (H, V), bf16.
        self.w_out = jax.random.uniform(k[4], (hidden_size, output_size),
                                        jnp.float32, -bound, bound).astype(jnp.bfloat16)
        self.b_out = jax.random.uniform(k[5], (output_size,),
                                        jnp.float32, -bound, bound).reshape(1, output_size)

    def decode(self, tokens, hidden):
        """Teacher-forced multi-step decode: tokens (T,), hidden = (h0, c0) each (1,1,H).
           Returns (log_probs (T, V), (hT, cT) each (1,1,H)). One kernel launch."""
        h0, c0 = hidden
        H = self.hidden_size
        h0c0 = jnp.concatenate([h0.reshape(1, H), c0.reshape(1, H)], axis=0)
        tokens = jnp.asarray(tokens, dtype=jnp.int32).reshape(-1)
        logp_all, hc = _decode(tokens, self.embedding, h0c0, self.w_gates,
                               self.b_gates, self.w_out, self.b_out)
        h_new = hc[0:1].reshape(1, 1, H)
        c_new = hc[1:2].reshape(1, 1, H)
        return logp_all, (h_new, c_new)

    def __call__(self, token, hidden):
        """Single step, matching the PyTorch module's forward:
           token: int token id; hidden: (h0, c0) each (1,1,H).
           Returns (log_probs (1, V), (h1, c1) each (1,1,H))."""
        logp_all, new_hidden = self.decode(jnp.asarray(token, jnp.int32).reshape(1), hidden)
        return logp_all, new_hidden


def _reference_step(dec, tok, h, c):
    """Pure-JAX reference of one decode step (mirrors kernel math incl. bf16 casts)."""
    H = dec.hidden_size
    x = jnp.maximum(dec.embedding[jnp.asarray(tok)].reshape(1, -1), 0.0)
    xh = jnp.concatenate([x, h], axis=-1).astype(jnp.bfloat16)
    gates = jnp.dot(xh, dec.w_gates, preferred_element_type=jnp.float32) + dec.b_gates
    i = jax.nn.sigmoid(gates[:, 0:H])
    f = jax.nn.sigmoid(gates[:, H:2 * H])
    g = jnp.tanh(gates[:, 2 * H:3 * H])
    o = jax.nn.sigmoid(gates[:, 3 * H:4 * H])
    c1 = f * c + i * g
    h1 = o * jnp.tanh(c1)
    logits = jnp.dot(h1.astype(jnp.bfloat16), dec.w_out,
                     preferred_element_type=jnp.float32) + dec.b_out
    logp = jax.nn.log_softmax(logits, axis=1)
    return logp, h1, c1


if __name__ == "__main__":
    # Small, deterministic, lane-aligned configuration.
    output_size = 256      # vocab size V (multiple of 128)
    embedding_size = 128   # E
    hidden_size = 128      # H (lane-aligned gate slices / outputs)

    key = jax.random.PRNGKey(0)
    k_emb, k_h, k_c, k_params, k_tok = jax.random.split(key, 5)

    embedding_matrix = jax.random.normal(
        k_emb, (output_size, embedding_size), jnp.float32)

    decoder = BiLSTMDecoderPallas(output_size, embedding_size, hidden_size,
                                  embedding_matrix, key=k_params)

    h0 = jax.random.normal(k_h, (1, 1, hidden_size), jnp.float32)
    c0 = jax.random.normal(k_c, (1, 1, hidden_size), jnp.float32)

    # --- (a) single-step forward: exact PyTorch-module semantics ---------------
    token = jnp.array(7, dtype=jnp.int32)
    logp, (h1, c1) = decoder(token, (h0, c0))
    jax.block_until_ready((logp, h1, c1))

    ref_logp, ref_h1, ref_c1 = _reference_step(
        decoder, 7, h0.reshape(1, hidden_size), c0.reshape(1, hidden_size))
    np.testing.assert_allclose(np.asarray(logp), np.asarray(ref_logp),
                               rtol=1e-4, atol=1e-4)
    np.testing.assert_allclose(np.asarray(h1).reshape(1, -1), np.asarray(ref_h1),
                               rtol=1e-4, atol=1e-4)
    np.testing.assert_allclose(np.asarray(c1).reshape(1, -1), np.asarray(ref_c1),
                               rtol=1e-4, atol=1e-4)
    assert logp.shape == (1, output_size)
    assert h1.shape == (1, 1, hidden_size) and c1.shape == (1, 1, hidden_size)

    # --- (b) multi-step teacher-forced decode: T steps in ONE kernel launch ----
    T = 8
    tokens = jax.random.randint(k_tok, (T,), 0, output_size, dtype=jnp.int32)
    logp_all, (hT, cT) = decoder.decode(tokens, (h0, c0))
    jax.block_until_ready((logp_all, hT, cT))

    h_ref = h0.reshape(1, hidden_size)
    c_ref = c0.reshape(1, hidden_size)
    ref_rows = []
    for i in range(T):
        lp, h_ref, c_ref = _reference_step(decoder, int(tokens[i]), h_ref, c_ref)
        ref_rows.append(np.asarray(lp))
    ref_all = np.concatenate(ref_rows, axis=0)

    np.testing.assert_allclose(np.asarray(logp_all), ref_all, rtol=1e-4, atol=1e-4)
    np.testing.assert_allclose(np.asarray(hT).reshape(1, -1), np.asarray(h_ref),
                               rtol=1e-4, atol=1e-4)
    np.testing.assert_allclose(np.asarray(cT).reshape(1, -1), np.asarray(c_ref),
                               rtol=1e-4, atol=1e-4)
    assert logp_all.shape == (T, output_size)

    print("KERNEL_OK")
</pallas_src>

<mosaic_0001>
module attributes {stable_mosaic.version = 11 : i64} {
  func.func @_decoder_kernel(%arg0: i32, %arg1: memref<1xi32, #tpu.memory_space<smem>>, %arg2: memref<256x128xf32, #tpu.memory_space<vmem>>, %arg3: memref<2x128xf32, #tpu.memory_space<vmem>>, %arg4: memref<256x512xbf16, #tpu.memory_space<vmem>>, %arg5: memref<1x512xf32, #tpu.memory_space<vmem>>, %arg6: memref<128x256xbf16, #tpu.memory_space<vmem>>, %arg7: memref<1x256xf32, #tpu.memory_space<vmem>>, %arg8: memref<1x256xf32, #tpu.memory_space<vmem>>, %arg9: memref<2x128xf32, #tpu.memory_space<vmem>>) attributes {dimension_semantics = [#tpu.dimension_semantics<arbitrary>], iteration_bounds = array<i64: 1>, scalar_prefetch = 1 : i64, scratch_operands = 0 : i64, tpu.core_type = #tpu.core_type<tc>, window_params = [{pipeline_mode = #tpu.pipeline_mode<synchronous>, transform_indices = @transform_0, window_bounds = array<i64: 256, 128>}, {pipeline_mode = #tpu.pipeline_mode<synchronous>, transform_indices = @transform_1, window_bounds = array<i64: 2, 128>}, {pipeline_mode = #tpu.pipeline_mode<synchronous>, transform_indices = @transform_2, window_bounds = array<i64: 256, 512>}, {pipeline_mode = #tpu.pipeline_mode<synchronous>, transform_indices = @transform_3, window_bounds = array<i64: 1, 512>}, {pipeline_mode = #tpu.pipeline_mode<synchronous>, transform_indices = @transform_4, window_bounds = array<i64: 128, 256>}, {pipeline_mode = #tpu.pipeline_mode<synchronous>, transform_indices = @transform_5, window_bounds = array<i64: 1, 256>}, {pipeline_mode = #tpu.pipeline_mode<synchronous>, transform_indices = @transform_6, window_bounds = array<i64: 1, 256>}, {pipeline_mode = #tpu.pipeline_mode<synchronous>, transform_indices = @transform_7, window_bounds = array<i64: 2, 128>}]} {
    %c0_i32 = arith.constant 0 : i32
    %0 = arith.cmpi eq, %arg0, %c0_i32 : i32
    %1 = arith.extui %0 : i1 to i32
    %c0_i32_0 = arith.constant 0 : i32
    %2 = arith.cmpi ne, %1, %c0_i32_0 : i32
    scf.if %2 {
      %c0_24 = arith.constant 0 : index
      %c0_25 = arith.constant 0 : index
      %61 = vector.load %arg3[%c0_24, %c0_25] : memref<2x128xf32, #tpu.memory_space<vmem>>, vector<2x128xf32>
      %c0_26 = arith.constant 0 : index
      %c0_27 = arith.constant 0 : index
      %62 = vector.load %arg9[%c0_26, %c0_27] : memref<2x128xf32, #tpu.memory_space<vmem>>, vector<2x128xf32>
      tpu.vector_store %arg9[%c0_26, %c0_27], %61 {strides = array<i32>} : memref<2x128xf32, #tpu.memory_space<vmem>>, vector<2x128xf32>,
    } else {
    }
    %3 = arith.index_cast %arg0 : i32 to index
    %4 = memref.load %arg1[%3] : memref<1xi32, #tpu.memory_space<smem>>
    %5 = arith.index_cast %4 : i32 to index
    %c0 = arith.constant 0 : index
    %6 = vector.load %arg2[%5, %c0] : memref<256x128xf32, #tpu.memory_space<vmem>>, vector<1x128xf32>
    %cst = arith.constant 0.000000e+00 : f32
    %7 = vector.broadcast %cst : f32 to vector<1x128xf32>
    %8 = arith.maximumf %6, %7 : vector<1x128xf32>
    %c0_1 = arith.constant 0 : index
    %c0_2 = arith.constant 0 : index
    %9 = vector.load %arg9[%c0_1, %c0_2] : memref<2x128xf32, #tpu.memory_space<vmem>>, vector<1x128xf32>
    %c1 = arith.constant 1 : index
    %c0_3 = arith.constant 0 : index
    %10 = vector.load %arg9[%c1, %c0_3] : memref<2x128xf32, #tpu.memory_space<vmem>>, vector<1x128xf32>
    %11 = tpu.concatenate %8, %9 in 1 : vector<1x128xf32>, vector<1x128xf32> -> vector<1x256xf32>
    %12 = arith.truncf %11 : vector<1x256xf32> to vector<1x256xbf16>
    %c0_4 = arith.constant 0 : index
    %c0_5 = arith.constant 0 : index
    %13 = vector.load %arg4[%c0_4, %c0_5] : memref<256x512xbf16, #tpu.memory_space<vmem>>, vector<256x512xbf16>
    %cst_6 = arith.constant dense<0.000000e+00> : vector<1x512xf32>
    %14 = tpu.matmul %12, %13, %cst_6 {dimension_numbers = #tpu.dot_dimension_numbers<[1], [0], [0], [1], [0, 0, 1, 1], [], []>} : vector<1x256xbf16>, vector<256x512xbf16>, vector<1x512xf32> -> vector<1x512xf32>
    %c0_7 = arith.constant 0 : index
    %c0_8 = arith.constant 0 : index
    %15 = vector.load %arg5[%c0_7, %c0_8] : memref<1x512xf32, #tpu.memory_space<vmem>>, vector<1x512xf32>
    %16 = arith.addf %14, %15 : vector<1x512xf32>
    %17 = vector.extract_strided_slice %16 {offsets = [0, 0], sizes = [1, 128], strides = [1, 1]} : vector<1x512xf32> to vector<1x128xf32>
    %18 = arith.negf %17 : vector<1x128xf32>
    %19 = math.exp %18 : vector<1x128xf32>
    %cst_9 = arith.constant 1.000000e+00 : f32
    %20 = vector.broadcast %cst_9 : f32 to vector<1x128xf32>
    %21 = arith.addf %20, %19 : vector<1x128xf32>
    %22 = arith.divf %20, %21 : vector<1x128xf32>
    %23 = vector.extract_strided_slice %16 {offsets = [0, 128], sizes = [1, 128], strides = [1, 1]} : vector<1x512xf32> to vector<1x128xf32>
    %24 = arith.negf %23 : vector<1x128xf32>
    %25 = math.exp %24 : vector<1x128xf32>
    %cst_10 = arith.constant 1.000000e+00 : f32
    %26 = vector.broadcast %cst_10 : f32 to vector<1x128xf32>
    %27 = arith.addf %26, %25 : vector<1x128xf32>
    %28 = arith.divf %26, %27 : vector<1x128xf32>
    %29 = vector.extract_strided_slice %16 {offsets = [0, 256], sizes = [1, 128], strides = [1, 1]} : vector<1x512xf32> to vector<1x128xf32>
    %30 = math.tanh %29 : vector<1x128xf32>
    %31 = vector.extract_strided_slice %16 {offsets = [0, 384], sizes = [1, 128], strides = [1, 1]} : vector<1x512xf32> to vector<1x128xf32>
    %32 = arith.negf %31 : vector<1x128xf32>
    %33 = math.exp %32 : vector<1x128xf32>
    %cst_11 = arith.constant 1.000000e+00 : f32
    %34 = vector.broadcast %cst_11 : f32 to vector<1x128xf32>
    %35 = arith.addf %34, %33 : vector<1x128xf32>
    %36 = arith.divf %34, %35 : vector<1x128xf32>
    %37 = arith.mulf %28, %10 : vector<1x128xf32>
    %38 = arith.mulf %22, %30 : vector<1x128xf32>
    %39 = arith.addf %37, %38 : vector<1x128xf32>
    %40 = math.tanh %39 : vector<1x128xf32>
    %41 = arith.mulf %36, %40 : vector<1x128xf32>
    %42 = arith.truncf %41 : vector<1x128xf32> to vector<1x128xbf16>
    %c0_12 = arith.constant 0 : index
    %c0_13 = arith.constant 0 : index
    %43 = vector.load %arg6[%c0_12, %c0_13] : memref<128x256xbf16, #tpu.memory_space<vmem>>, vector<128x256xbf16>
    %cst_14 = arith.constant dense<0.000000e+00> : vector<1x256xf32>
    %44 = tpu.matmul %42, %43, %cst_14 {dimension_numbers = #tpu.dot_dimension_numbers<[1], [0], [0], [1], [0, 0, 1, 1], [], []>} : vector<1x128xbf16>, vector<128x256xbf16>, vector<1x256xf32> -> vector<1x256xf32>
    %c0_15 = arith.constant 0 : index
    %c0_16 = arith.constant 0 : index
    %45 = vector.load %arg7[%c0_15, %c0_16] : memref<1x256xf32, #tpu.memory_space<vmem>>, vector<1x256xf32>
    %46 = arith.addf %44, %45 : vector<1x256xf32>
    %cst_17 = arith.constant dense<0xFF800000> : vector<1xf32>
    %47 = vector.multi_reduction <maximumf>, %46, %cst_17 [1] : vector<1x256xf32> to vector<1xf32>
    %48 = vector.shape_cast %47 : vector<1xf32> to vector<1x1xf32>
    %49 = vector.broadcast %48 : vector<1x1xf32> to vector<1x256xf32>
    %50 = arith.subf %46, %49 : vector<1x256xf32>
    %51 = math.exp %50 : vector<1x256xf32>
    %cst_18 = arith.constant dense<0.000000e+00> : vector<1xf32>
    %52 = vector.multi_reduction <add>, %51, %cst_18 [1] : vector<1x256xf32> to vector<1xf32>
    %53 = vector.shape_cast %52 : vector<1xf32> to vector<1x1xf32>
    %54 = math.log %53 : vector<1x1xf32>
    %55 = vector.broadcast %54 : vector<1x1xf32> to vector<1x256xf32>
    %56 = arith.subf %50, %55 : vector<1x256xf32>
    %57 = arith.index_cast %arg0 : i32 to index
    %c0_19 = arith.constant 0 : index
    %58 = vector.load %arg8[%57, %c0_19] : memref<1x256xf32, #tpu.memory_space<vmem>>, vector<1x256xf32>
    tpu.vector_store %arg8[%57, %c0_19], %56 {strides = array<i32>} : memref<1x256xf32, #tpu.memory_space<vmem>>, vector<1x256xf32>,
    %c0_20 = arith.constant 0 : index
    %c0_21 = arith.constant 0 : index
    %59 = vector.load %arg9[%c0_20, %c0_21] : memref<2x128xf32, #tpu.memory_space<vmem>>, vector<1x128xf32>
    tpu.vector_store %arg9[%c0_20, %c0_21], %41 {strides = array<i32>} : memref<2x128xf32, #tpu.memory_space<vmem>>, vector<1x128xf32>,
    %c1_22 = arith.constant 1 : index
    %c0_23 = arith.constant 0 : index
    %60 = vector.load %arg9[%c1_22, %c0_23] : memref<2x128xf32, #tpu.memory_space<vmem>>, vector<1x128xf32>
    tpu.vector_store %arg9[%c1_22, %c0_23], %39 {strides = array<i32>} : memref<2x128xf32, #tpu.memory_space<vmem>>, vector<1x128xf32>,
    return
  }
  func.func @transform_0(%arg0: i32, %arg1: memref<1xi32, #tpu.memory_space<smem>>) -> (i32, i32) {
    %c0_i32 = arith.constant 0 : i32
    %c0_i32_0 = arith.constant 0 : i32
    %c0_i32_1 = arith.constant 0 : i32
    return %c0_i32, %c0_i32_0 : i32, i32
  }
  func.func @transform_1(%arg0: i32, %arg1: memref<1xi32, #tpu.memory_space<smem>>) -> (i32, i32) {
    %c0_i32 = arith.constant 0 : i32
    %c0_i32_0 = arith.constant 0 : i32
    %c0_i32_1 = arith.constant 0 : i32
    return %c0_i32, %c0_i32_0 : i32, i32
  }
  func.func @transform_2(%arg0: i32, %arg1: memref<1xi32, #tpu.memory_space<smem>>) -> (i32, i32) {
    %c0_i32 = arith.constant 0 : i32
    %c0_i32_0 = arith.constant 0 : i32
    %c0_i32_1 = arith.constant 0 : i32
    return %c0_i32, %c0_i32_0 : i32, i32
  }
  func.func @transform_3(%arg0: i32, %arg1: memref<1xi32, #tpu.memory_space<smem>>) -> (i32, i32) {
    %c0_i32 = arith.constant 0 : i32
    %c0_i32_0 = arith.constant 0 : i32
    %c0_i32_1 = arith.constant 0 : i32
    return %c0_i32, %c0_i32_0 : i32, i32
  }
  func.func @transform_4(%arg0: i32, %arg1: memref<1xi32, #tpu.memory_space<smem>>) -> (i32, i32) {
    %c0_i32 = arith.constant 0 : i32
    %c0_i32_0 = arith.constant 0 : i32
    %c0_i32_1 = arith.constant 0 : i32
    return %c0_i32, %c0_i32_0 : i32, i32
  }
  func.func @transform_5(%arg0: i32, %arg1: memref<1xi32, #tpu.memory_space<smem>>) -> (i32, i32) {
    %c0_i32 = arith.constant 0 : i32
    %c0_i32_0 = arith.constant 0 : i32
    %c0_i32_1 = arith.constant 0 : i32
    return %c0_i32, %c0_i32_0 : i32, i32
  }
  func.func @transform_6(%arg0: i32, %arg1: memref<1xi32, #tpu.memory_space<smem>>) -> (i32, i32) {
    %c0_i32 = arith.constant 0 : i32
    %c0_i32_0 = arith.constant 0 : i32
    %c0_i32_1 = arith.constant 0 : i32
    return %c0_i32, %c0_i32_0 : i32, i32
  }
  func.func @transform_7(%arg0: i32, %arg1: memref<1xi32, #tpu.memory_space<smem>>) -> (i32, i32) {
    %c0_i32 = arith.constant 0 : i32
    %c0_i32_0 = arith.constant 0 : i32
    %c0_i32_1 = arith.constant 0 : i32
    return %c0_i32, %c0_i32_0 : i32, i32
  }
}

</mosaic_0001>

<llo_original>
// kernel: _decode.1
$region0: #{_decode.1}
  #allocation0 [shape = 'u32[]', space=smem, size = 0x4, offset = 0x4, fixed_abs, tag = 'smem constant byte address 0x4 - core index']
  #allocation1 [shape = 'u32[144,128]{1,0:T(1,128)}', space=vmem, size = 0x12000, scoped, tag = 'internal scratch']
  #allocation2 [shape = 's32[1]{0}', space=sflag, size = 0x4, scoped, tag = 'scoped memory for _decode.1']
  #allocation3 [shape = 's32[1]{0:T(128)S(6)}', space=smem, size = 0x200, scoped, tag = 'prefetched SMEM operand 0']
  %s0 = inlined_call_operand.<no memory space> [shape: s32[1], index: 0, kind: input, shape index: {}]
  %s1 = inlined_call_operand.hbm [shape: f32[256,128], index: 1, kind: input, shape index: {}]
  %s2 = inlined_call_operand.vmem [shape: f32[2,128], index: 2, kind: input, shape index: {}]
  %s3 = inlined_call_operand.hbm [shape: bf16[256,512], index: 3, kind: input, shape index: {}]
  %s4 = inlined_call_operand.vmem [shape: f32[1,512], index: 4, kind: input, shape index: {}]
  %s5 = inlined_call_operand.hbm [shape: bf16[128,256], index: 5, kind: input, shape index: {}]
  %s6 = inlined_call_operand.vmem [shape: f32[1,256], index: 6, kind: input, shape index: {}]
  %s7 = inlined_call_operand.hbm [shape: f32[1,256], index: 7, kind: output, shape index: {0}]
  %s8 = inlined_call_operand.hbm [shape: f32[2,128], index: 8, kind: output, shape index: {1}]
  %9 = xla_tuple %s7, %s8
  %s10 = sld [smem:[#allocation0]]
  $region58: #{_decode.1} parent=0
    _
  %s12 = ssub.s32 1, %s10
  %s13 = scalar_select 0, %s12, %s10
  %14 = sst [smem:[#allocation3]] %s0
  $region1: #{_decode.1} parent=0
    #allocation4 [shape = 'u8[131072]{0}', space=vmem, size = 0x20000, scoped, tag = 'input window, operand 1, single buffered']
    #allocation5 [shape = 's32[1]{0}', space=sflag, size = 0x4, scoped, tag = 'scoped memory for _decode.1']
    #allocation6 [shape = 's32[1]{0}', space=sflag, size = 0x4, scoped, tag = 'scoped memory for _decode.1']
    #allocation7 [shape = 'u8[262144]{0}', space=vmem, size = 0x40000, scoped, tag = 'input window, operand 3, single buffered']
    #allocation8 [shape = 's32[1]{0}', space=sflag, size = 0x4, scoped, tag = 'scoped memory for _decode.1']
    #allocation9 [shape = 'u8[65536]{0}', space=vmem, size = 0x10000, scoped, tag = 'input window, operand 5, single buffered']
    #allocation10 [shape = 'u8[1024]{0}', space=vmem, size = 0x400, scoped, tag = 'output window, operand 0, single buffered']
    #allocation11 [shape = 'u8[1024]{0}', space=vmem, size = 0x400, scoped, tag = 'output window, operand 1, single buffered']
    #allocation12 [shape = 's32[1]{0}', space=sflag, size = 0x4, scoped, tag = 'scoped memory for _decode.1']
    %15 = vsyncpa [#allocation5], 0
    %16 = vsyncpa [#allocation8], 0
    %17 = vsyncpa [#allocation6], 0
    %18 = vsyncpa [#allocation12], 0
    // Predicated region
    $region2: #{_decode.1} parent=1 // pred_check
      _
    $region3: #{_decode.1} parent=1 // pred_check_branch
      %20 = sbr.rel (0) target = $region5
    $region4: #{_decode.1} parent=1 // pred_region
      %s22 = ssub.s32 4096, 4096
      %23 = vsyncadd [#allocation5], %s22
      %s24 = sshll.u32 [#allocation4], 4
      %s25 = int_to_ptr.vmem [resolvable:$true] %s24
      %30 = dma.hbm_to_vmem [thread:$0]  %s1, 4096, %s25, [#allocation5], 128, 128, 8
    $region5: #{_decode.1} parent=1 // pred_fallthru
      _
    // Predicated region
    $region6: #{_decode.1} parent=1 // pred_check
      _
    $region7: #{_decode.1} parent=1 // pred_check_branch
      %32 = sbr.rel (0) target = $region9
    $region8: #{_decode.1} parent=1 // pred_region
      _
    $region9: #{_decode.1} parent=1 // pred_fallthru
      _
    // Predicated region
    $region10: #{_decode.1} parent=1 // pred_check
      _
    $region11: #{_decode.1} parent=1 // pred_check_branch
      %34 = sbr.rel (0) target = $region13
    $region12: #{_decode.1} parent=1 // pred_region
      %s36 = ssub.s32 8192, 8192
      %37 = vsyncadd [#allocation8], %s36
      %s38 = sshll.u32 [#allocation7], 4
      %s39 = int_to_ptr.vmem [resolvable:$true] %s38
      %44 = dma.hbm_to_vmem [thread:$0]  %s3, 8192, %s39, [#allocation8], 256, 256, 16
    $region13: #{_decode.1} parent=1 // pred_fallthru
      _
    // Predicated region
    $region14: #{_decode.1} parent=1 // pred_check
      _
    $region15: #{_decode.1} parent=1 // pred_check_branch
      %46 = sbr.rel (0) target = $region17
    $region16: #{_decode.1} parent=1 // pred_region
      _
    $region17: #{_decode.1} parent=1 // pred_fallthru
      _
    // Predicated region
    $region18: #{_decode.1} parent=1 // pred_check
      _
    $region19: #{_decode.1} parent=1 // pred_check_branch
      %48 = sbr.rel (0) target = $region21
    $region20: #{_decode.1} parent=1 // pred_region
      %s50 = ssub.s32 2048, 2048
      %51 = vsyncadd [#allocation8], %s50
      %s52 = sshll.u32 [#allocation9], 4
      %s53 = int_to_ptr.vmem [resolvable:$true] %s52
      %58 = dma.hbm_to_vmem [thread:$0]  %s5, 2048, %s53, [#allocation8], 128, 128, 8
    $region21: #{_decode.1} parent=1 // pred_fallthru
      _
    // Predicated region
    $region22: #{_decode.1} parent=1 // pred_check
      _
    $region23: #{_decode.1} parent=1 // pred_check_branch
      %60 = sbr.rel (0) target = $region25
    $region24: #{_decode.1} parent=1 // pred_region
      _
    $region25: #{_decode.1} parent=1 // pred_fallthru
      _
    // Predicated region
    $region26: #{_decode.1} parent=1 // pred_check
      _
    $region27: #{_decode.1} parent=1 // pred_check_branch
      %62 = sbr.rel (0) target = $region29
    $region28: #{_decode.1} parent=1 // pred_region
      %63 = dma.done [#allocation5], 4096
    $region29: #{_decode.1} parent=1 // pred_fallthru
      _
    // Predicated region
    $region30: #{_decode.1} parent=1 // pred_check
      _
    $region31: #{_decode.1} parent=1 // pred_check_branch
      %65 = sbr.rel (0) target = $region33
    $region32: #{_decode.1} parent=1 // pred_region
      %66 = dma.done [#allocation8], 8192
    $region33: #{_decode.1} parent=1 // pred_fallthru
      _
    // Predicated region
    $region34: #{_decode.1} parent=1 // pred_check
      _
    $region35: #{_decode.1} parent=1 // pred_check_branch
      %68 = sbr.rel (0) target = $region37
    $region36: #{_decode.1} parent=1 // pred_region
      %69 = dma.done [#allocation8], 2048
    $region37: #{_decode.1} parent=1 // pred_fallthru
      _
    %p71 = scmp.eq.s32.totalorder 0, 0
    // Predicated region
    $region38: #{_decode.1} parent=1 // pred_check
      %p72 = pneg %p71
    $region39: #{_decode.1} parent=1 // pred_check_branch
      %74 = sbr.rel (%p72) target = $region41
    $region40: #{_decode.1} parent=1 // pred_region
      %v75 = vld [vmem:[%s2] sm:$0x3]
      %76 = vst [vmem:[#allocation11] sm:$0x3] %v75
    $region41: #{_decode.1} parent=1 // pred_fallthru
      _
    %s77 = sld [smem:[#allocation3]]
    %s78 = scalar_lea.vmem [#allocation4], %s77
    %v79 = vld [vmem:[%s78] sm:$0x1]
    %v80 = vmax.f32 %v79, 0.0
    %v81 = vld [vmem:[#allocation11] sm:$0x1]
    %v82 = vld [vmem:[#allocation11 + $0x1] sm:$0x1]
    %v83 = vpack.c.bf16 %v80, %v80
    %v84 = vpack.c.bf16 %v81, %v81
    %v85 = vld [vmem:[#allocation7] sm:$0xff]
    %v86 = vld [vmem:[#allocation7 + $0x8] sm:$0xff]
    %v87 = vld [vmem:[#allocation7 + $0x10] sm:$0xff]
    %v88 = vld [vmem:[#allocation7 + $0x18] sm:$0xff]
    %v89 = vld [vmem:[#allocation7 + $0x20] sm:$0xff]
    %v90 = vld [vmem:[#allocation7 + $0x28] sm:$0xff]
    %v91 = vld [vmem:[#allocation7 + $0x30] sm:$0xff]
    %v92 = vld [vmem:[#allocation7 + $0x38] sm:$0xff]
    %v93 = vld [vmem:[#allocation7 + $0x40] sm:$0xff]
    %v94 = vld [vmem:[#allocation7 + $0x48] sm:$0xff]
    %v95 = vld [vmem:[#allocation7 + $0x50] sm:$0xff]
    %v96 = vld [vmem:[#allocation7 + $0x58] sm:$0xff]
    %v97 = vld [vmem:[#allocation7 + $0x60] sm:$0xff]
    %v98 = vld [vmem:[#allocation7 + $0x68] sm:$0xff]
    %v99 = vld [vmem:[#allocation7 + $0x70] sm:$0xff]
    %v100 = vld [vmem:[#allocation7 + $0x78] sm:$0xff]
    %v101 = vld [vmem:[#allocation7 + $0x80] sm:$0xff]
    %v102 = vld [vmem:[#allocation7 + $0x88] sm:$0xff]
    %v103 = vld [vmem:[#allocation7 + $0x90] sm:$0xff]
    %v104 = vld [vmem:[#allocation7 + $0x98] sm:$0xff]
    %v105 = vld [vmem:[#allocation7 + $0xa0] sm:$0xff]
    %v106 = vld [vmem:[#allocation7 + $0xa8] sm:$0xff]
    %v107 = vld [vmem:[#allocation7 + $0xb0] sm:$0xff]
    %v108 = vld [vmem:[#allocation7 + $0xb8] sm:$0xff]
    %v109 = vld [vmem:[#allocation7 + $0xc0] sm:$0xff]
    %v110 = vld [vmem:[#allocation7 + $0xc8] sm:$0xff]
    %v111 = vld [vmem:[#allocation7 + $0xd0] sm:$0xff]
    %v112 = vld [vmem:[#allocation7 + $0xd8] sm:$0xff]
    %v113 = vld [vmem:[#allocation7 + $0xe0] sm:$0xff]
    %v114 = vld [vmem:[#allocation7 + $0xe8] sm:$0xff]
    %v115 = vld [vmem:[#allocation7 + $0xf0] sm:$0xff]
    %v116 = vld [vmem:[#allocation7 + $0xf8] sm:$0xff]
    %v117 = vld [vmem:[#allocation7 + $0x100] sm:$0xff]
    %v118 = vld [vmem:[#allocation7 + $0x108] sm:$0xff]
    %v119 = vld [vmem:[#allocation7 + $0x110] sm:$0xff]
    %v120 = vld [vmem:[#allocation7 + $0x118] sm:$0xff]
    %v121 = vld [vmem:[#allocation7 + $0x120] sm:$0xff]
    %v122 = vld [vmem:[#allocation7 + $0x128] sm:$0xff]
    %v123 = vld [vmem:[#allocation7 + $0x130] sm:$0xff]
    %v124 = vld [vmem:[#allocation7 + $0x138] sm:$0xff]
    %v125 = vld [vmem:[#allocation7 + $0x140] sm:$0xff]
    %v126 = vld [vmem:[#allocation7 + $0x148] sm:$0xff]
    %v127 = vld [vmem:[#allocation7 + $0x150] sm:$0xff]
    %v128 = vld [vmem:[#allocation7 + $0x158] sm:$0xff]
    %v129 = vld [vmem:[#allocation7 + $0x160] sm:$0xff]
    %v130 = vld [vmem:[#allocation7 + $0x168] sm:$0xff]
    %v131 = vld [vmem:[#allocation7 + $0x170] sm:$0xff]
    %v132 = vld [vmem:[#allocation7 + $0x178] sm:$0xff]
    %v133 = vld [vmem:[#allocation7 + $0x180] sm:$0xff]
    %v134 = vld [vmem:[#allocation7 + $0x188] sm:$0xff]
    %v135 = vld [vmem:[#allocation7 + $0x190] sm:$0xff]
    %v136 = vld [vmem:[#allocation7 + $0x198] sm:$0xff]
    %v137 = vld [vmem:[#allocation7 + $0x1a0] sm:$0xff]
    %v138 = vld [vmem:[#allocation7 + $0x1a8] sm:$0xff]
    %v139 = vld [vmem:[#allocation7 + $0x1b0] sm:$0xff]
    %v140 = vld [vmem:[#allocation7 + $0x1b8] sm:$0xff]
    %v141 = vld [vmem:[#allocation7 + $0x1c0] sm:$0xff]
    %v142 = vld [vmem:[#allocation7 + $0x1c8] sm:$0xff]
    %v143 = vld [vmem:[#allocation7 + $0x1d0] sm:$0xff]
    %v144 = vld [vmem:[#allocation7 + $0x1d8] sm:$0xff]
    %v145 = vld [vmem:[#allocation7 + $0x1e0] sm:$0xff]
    %v146 = vld [vmem:[#allocation7 + $0x1e8] sm:$0xff]
    %v147 = vld [vmem:[#allocation7 + $0x1f0] sm:$0xff]
    %v148 = vld [vmem:[#allocation7 + $0x1f8] sm:$0xff]
    %v149 = vld [vmem:[%s4] sm:$0xf]
    %v214 = vunpack.c.l.b16 %v85
    %v215 = vunpack.c.h.b16 %v85
    %v216 = vunpack.c.l.b16 %v86
    %v217 = vunpack.c.h.b16 %v86
    %v218 = vunpack.c.l.b16 %v87
    %v219 = vunpack.c.h.b16 %v87
    %v220 = vunpack.c.l.b16 %v88
    %v221 = vunpack.c.h.b16 %v88
    %v222 = vunpack.c.l.b16 %v89
    %v223 = vunpack.c.h.b16 %v89
    %v224 = vunpack.c.l.b16 %v90
    %v225 = vunpack.c.h.b16 %v90
    %v226 = vunpack.c.l.b16 %v91
    %v227 = vunpack.c.h.b16 %v91
    %v228 = vunpack.c.l.b16 %v92
    %v229 = vunpack.c.h.b16 %v92
    %v230 = vunpack.c.l.b16 %v93
    %v231 = vunpack.c.h.b16 %v93
    %v232 = vunpack.c.l.b16 %v94
    %v233 = vunpack.c.h.b16 %v94
    %v234 = vunpack.c.l.b16 %v95
    %v235 = vunpack.c.h.b16 %v95
    %v236 = vunpack.c.l.b16 %v96
    %v237 = vunpack.c.h.b16 %v96
    %v238 = vunpack.c.l.b16 %v97
    %v239 = vunpack.c.h.b16 %v97
    %v240 = vunpack.c.l.b16 %v98
    %v241 = vunpack.c.h.b16 %v98
    %v242 = vunpack.c.l.b16 %v99
    %v243 = vunpack.c.h.b16 %v99
    %v244 = vunpack.c.l.b16 %v100
    %v245 = vunpack.c.h.b16 %v100
    %v246 = vunpack.c.l.b16 %v101
    %v247 = vunpack.c.h.b16 %v101
    %v248 = vunpack.c.l.b16 %v102
    %v249 = vunpack.c.h.b16 %v102
    %v250 = vunpack.c.l.b16 %v103
    %v251 = vunpack.c.h.b16 %v103
    %v252 = vunpack.c.l.b16 %v104
    %v253 = vunpack.c.h.b16 %v104
    %v254 = vunpack.c.l.b16 %v105
    %v255 = vunpack.c.h.b16 %v105
    %v256 = vunpack.c.l.b16 %v106
    %v257 = vunpack.c.h.b16 %v106
    %v258 = vunpack.c.l.b16 %v107
    %v259 = vunpack.c.h.b16 %v107
    %v260 = vunpack.c.l.b16 %v108
    %v261 = vunpack.c.h.b16 %v108
    %v262 = vunpack.c.l.b16 %v109
    %v263 = vunpack.c.h.b16 %v109
    %v264 = vunpack.c.l.b16 %v110
    %v265 = vunpack.c.h.b16 %v110
    %v266 = vunpack.c.l.b16 %v111
    %v267 = vunpack.c.h.b16 %v111
    %v268 = vunpack.c.l.b16 %v112
    %v269 = vunpack.c.h.b16 %v112
    %v270 = vunpack.c.l.b16 %v113
    %v271 = vunpack.c.h.b16 %v113
    %v272 = vunpack.c.l.b16 %v114
    %v273 = vunpack.c.h.b16 %v114
    %v274 = vunpack.c.l.b16 %v115
    %v275 = vunpack.c.h.b16 %v115
    %v276 = vunpack.c.l.b16 %v116
    %v277 = vunpack.c.h.b16 %v116
    %v278 = vunpack.c.l.b16 %v117
    %v279 = vunpack.c.h.b16 %v117
    %v280 = vunpack.c.l.b16 %v118
    %v281 = vunpack.c.h.b16 %v118
    %v282 = vunpack.c.l.b16 %v119
    %v283 = vunpack.c.h.b16 %v119
    %v284 = vunpack.c.l.b16 %v120
    %v285 = vunpack.c.h.b16 %v120
    %v286 = vunpack.c.l.b16 %v121
    %v287 = vunpack.c.h.b16 %v121
    %v288 = vunpack.c.l.b16 %v122
    %v289 = vunpack.c.h.b16 %v122
    %v290 = vunpack.c.l.b16 %v123
    %v291 = vunpack.c.h.b16 %v123
    %v292 = vunpack.c.l.b16 %v124
    %v293 = vunpack.c.h.b16 %v124
    %v294 = vunpack.c.l.b16 %v125
    %v295 = vunpack.c.h.b16 %v125
    %v296 = vunpack.c.l.b16 %v126
    %v297 = vunpack.c.h.b16 %v126
    %v298 = vunpack.c.l.b16 %v127
    %v299 = vunpack.c.h.b16 %v127
    %v300 = vunpack.c.l.b16 %v128
    %v301 = vunpack.c.h.b16 %v128
    %v302 = vunpack.c.l.b16 %v129
    %v303 = vunpack.c.h.b16 %v129
    %v304 = vunpack.c.l.b16 %v130
    %v305 = vunpack.c.h.b16 %v130
    %v306 = vunpack.c.l.b16 %v131
    %v307 = vunpack.c.h.b16 %v131
    %v308 = vunpack.c.l.b16 %v132
    %v309 = vunpack.c.h.b16 %v132
    %v310 = vunpack.c.l.b16 %v133
    %v311 = vunpack.c.h.b16 %v133
    %v312 = vunpack.c.l.b16 %v134
    %v313 = vunpack.c.h.b16 %v134
    %v314 = vunpack.c.l.b16 %v135
    %v315 = vunpack.c.h.b16 %v135
    %v316 = vunpack.c.l.b16 %v136
    %v317 = vunpack.c.h.b16 %v136
    %v318 = vunpack.c.l.b16 %v137
    %v319 = vunpack.c.h.b16 %v137
    %v320 = vunpack.c.l.b16 %v138
    %v321 = vunpack.c.h.b16 %v138
    %v322 = vunpack.c.l.b16 %v139
    %v323 = vunpack.c.h.b16 %v139
    %v324 = vunpack.c.l.b16 %v140
    %v325 = vunpack.c.h.b16 %v140
    %v326 = vunpack.c.l.b16 %v141
    %v327 = vunpack.c.h.b16 %v141
    %v328 = vunpack.c.l.b16 %v142
    %v329 = vunpack.c.h.b16 %v142
    %v330 = vunpack.c.l.b16 %v143
    %v331 = vunpack.c.h.b16 %v143
    %v332 = vunpack.c.l.b16 %v144
    %v333 = vunpack.c.h.b16 %v144
    %v334 = vunpack.c.l.b16 %v145
    %v335 = vunpack.c.h.b16 %v145
    %v336 = vunpack.c.l.b16 %v146
    %v337 = vunpack.c.h.b16 %v146
    %v338 = vunpack.c.l.b16 %v147
    %v339 = vunpack.c.h.b16 %v147
    %v340 = vunpack.c.l.b16 %v148
    %v341 = vunpack.c.h.b16 %v148
    %v342 = vpack.c.b16 %v218, %v214
    %v343 = vpack.c.b16 %v219, %v215
    %v344 = vpack.c.b16 %v220, %v216
    %v345 = vpack.c.b16 %v221, %v217
    %v346 = vpack.c.b16 %v226, %v222
    %v347 = vpack.c.b16 %v227, %v223
    %v348 = vpack.c.b16 %v228, %v224
    %v349 = vpack.c.b16 %v229, %v225
    %v350 = vpack.c.b16 %v234, %v230
    %v351 = vpack.c.b16 %v235, %v231
    %v352 = vpack.c.b16 %v236, %v232
    %v353 = vpack.c.b16 %v237, %v233
    %v354 = vpack.c.b16 %v242, %v238
    %v355 = vpack.c.b16 %v243, %v239
    %v356 = vpack.c.b16 %v244, %v240
    %v357 = vpack.c.b16 %v245, %v241
    %v358 = vpack.c.b16 %v250, %v246
    %v359 = vpack.c.b16 %v251, %v247
    %v360 = vpack.c.b16 %v252, %v248
    %v361 = vpack.c.b16 %v253, %v249
    %v362 = vpack.c.b16 %v258, %v254
    %v363 = vpack.c.b16 %v259, %v255
    %v364 = vpack.c.b16 %v260, %v256
    %v365 = vpack.c.b16 %v261, %v257
    %v366 = vpack.c.b16 %v266, %v262
    %v367 = vpack.c.b16 %v267, %v263
    %v368 = vpack.c.b16 %v268, %v264
    %v369 = vpack.c.b16 %v269, %v265
    %v370 = vpack.c.b16 %v274, %v270
    %v371 = vpack.c.b16 %v275, %v271
    %v372 = vpack.c.b16 %v276, %v272
    %v373 = vpack.c.b16 %v277, %v273
    %v374 = vpack.c.b16 %v282, %v278
    %v375 = vpack.c.b16 %v283, %v279
    %v376 = vpack.c.b16 %v284, %v280
    %v377 = vpack.c.b16 %v285, %v281
    %v378 = vpack.c.b16 %v290, %v286
    %v379 = vpack.c.b16 %v291, %v287
    %v380 = vpack.c.b16 %v292, %v288
    %v381 = vpack.c.b16 %v293, %v289
    %v382 = vpack.c.b16 %v298, %v294
    %v383 = vpack.c.b16 %v299, %v295
    %v384 = vpack.c.b16 %v300, %v296
    %v385 = vpack.c.b16 %v301, %v297
    %v386 = vpack.c.b16 %v306, %v302
    %v387 = vpack.c.b16 %v307, %v303
    %v388 = vpack.c.b16 %v308, %v304
    %v389 = vpack.c.b16 %v309, %v305
    %v390 = vpack.c.b16 %v314, %v310
    %v391 = vpack.c.b16 %v315, %v311
    %v392 = vpack.c.b16 %v316, %v312
    %v393 = vpack.c.b16 %v317, %v313
    %v394 = vpack.c.b16 %v322, %v318
    %v395 = vpack.c.b16 %v323, %v319
    %v396 = vpack.c.b16 %v324, %v320
    %v397 = vpack.c.b16 %v325, %v321
    %v398 = vpack.c.b16 %v330, %v326
    %v399 = vpack.c.b16 %v331, %v327
    %v400 = vpack.c.b16 %v332, %v328
    %v401 = vpack.c.b16 %v333, %v329
    %v402 = vpack.c.b16 %v338, %v334
    %v403 = vpack.c.b16 %v339, %v335
    %v404 = vpack.c.b16 %v340, %v336
    %v405 = vpack.c.b16 %v341, %v337
    %v471 = vlaneseq
    %v472 = vshrl.u32 %v471, 7
    %v473 = vsub.s32 0, %v472
    %v474 = vrot.slane %v149, %v473
    %v475 = vlaneseq
    %v476 = vshrl.u32 %v475, 7
    %v477 = vsub.s32 1, %v476
    %v478 = vrot.slane %v149, %v477
    %v479 = vlaneseq
    %v480 = vshrl.u32 %v479, 7
    %v481 = vsub.s32 2, %v480
    %v482 = vrot.slane %v149, %v481
    %v483 = vlaneseq
    %v484 = vshrl.u32 %v483, 7
    %v485 = vsub.s32 3, %v484
    %v486 = vrot.slane %v149, %v485
    %491 = vmatprep.subr.bf16.mxu0 %v343
    %492 = vmatpush1.bf16.msra.mxu0 %v342
    %493 = vmatprep.subr.bf16.mxu0 %v347
    %494 = vmatpush1.bf16.msra.mxu0 %v346
    %495 = vmatprep.subr.bf16.mxu0 %v351
    %496 = vmatpush1.bf16.msra.mxu0 %v350
    %497 = vmatprep.subr.bf16.mxu0 %v355
    %498 = vmatpush1.bf16.msra.mxu0 %v354
    %499 = vmatprep.subr.bf16.mxu0 %v359
    %500 = vmatpush1.bf16.msra.mxu0 %v358
    %501 = vmatprep.subr.bf16.mxu0 %v363
    %502 = vmatpush1.bf16.msra.mxu0 %v362
    %503 = vmatprep.subr.bf16.mxu0 %v367
    %504 = vmatpush1.bf16.msra.mxu0 %v366
    %505 = vmatprep.subr.bf16.mxu0 %v371
    %506 = vmatpush1.bf16.msra.mxu0 %v370
    %507 = vmatprep.subr.bf16.mxu0 %v375
    %508 = vmatpush1.bf16.msra.mxu0 %v374
    %509 = vmatprep.subr.bf16.mxu0 %v379
    %510 = vmatpush1.bf16.msra.mxu0 %v378
    %511 = vmatprep.subr.bf16.mxu0 %v383
    %512 = vmatpush1.bf16.msra.mxu0 %v382
    %513 = vmatprep.subr.bf16.mxu0 %v387
    %514 = vmatpush1.bf16.msra.mxu0 %v386
    %515 = vmatprep.subr.bf16.mxu0 %v391
    %516 = vmatpush1.bf16.msra.mxu0 %v390
    %517 = vmatprep.subr.bf16.mxu0 %v395
    %518 = vmatpush1.bf16.msra.mxu0 %v394
    %519 = vmatprep.subr.bf16.mxu0 %v399
    %520 = vmatpush1.bf16.msra.mxu0 %v398
    %521 = vmatprep.subr.bf16.mxu0 %v403
    %522 = vmatpush1.bf16.msra.mxu0 %v402
    %523 = vmatprep.mubr.bf16.mxu0 %v84
    %524 = vmatmul.mubr.bf16.gmra.mrb[0].mxu0 %v83
    %v525 = vpop.f32.mrb[0].mxu0
    %v526 = vadd.f32 %v474, %v525
    %v527 = vpop.f32.mrb[0].mxu0
    %v528 = vadd.f32 %v478, %v527
    %v529 = vpop.f32.mrb[0].mxu0
    %v530 = vpop.f32.mrb[0].mxu0
    %531 = vdwg.mxu0
    %532 = vmatprep.subr.bf16.mxu0 %v345
    %533 = vmatpush1.bf16.msra.mxu0 %v344
    %534 = vmatprep.subr.bf16.mxu0 %v349
    %535 = vmatpush1.bf16.msra.mxu0 %v348
    %536 = vmatprep.subr.bf16.mxu0 %v353
    %537 = vmatpush1.bf16.msra.mxu0 %v352
    %538 = vmatprep.subr.bf16.mxu0 %v357
    %539 = vmatpush1.bf16.msra.mxu0 %v356
    %540 = vmatprep.subr.bf16.mxu0 %v361
    %541 = vmatpush1.bf16.msra.mxu0 %v360
    %542 = vmatprep.subr.bf16.mxu0 %v365
    %543 = vmatpush1.bf16.msra.mxu0 %v364
    %544 = vmatprep.subr.bf16.mxu0 %v369
    %545 = vmatpush1.bf16.msra.mxu0 %v368
    %546 = vmatprep.subr.bf16.mxu0 %v373
    %547 = vmatpush1.bf16.msra.mxu0 %v372
    %548 = vmatprep.subr.bf16.mxu0 %v377
    %549 = vmatpush1.bf16.msra.mxu0 %v376
    %550 = vmatprep.subr.bf16.mxu0 %v381
    %551 = vmatpush1.bf16.msra.mxu0 %v380
    %552 = vmatprep.subr.bf16.mxu0 %v385
    %553 = vmatpush1.bf16.msra.mxu0 %v384
    %554 = vmatprep.subr.bf16.mxu0 %v389
    %555 = vmatpush1.bf16.msra.mxu0 %v388
    %556 = vmatprep.subr.bf16.mxu0 %v393
    %557 = vmatpush1.bf16.msra.mxu0 %v392
    %558 = vmatprep.subr.bf16.mxu0 %v397
    %559 = vmatpush1.bf16.msra.mxu0 %v396
    %560 = vmatprep.subr.bf16.mxu0 %v401
    %561 = vmatpush1.bf16.msra.mxu0 %v400
    %562 = vmatprep.subr.bf16.mxu0 %v405
    %563 = vmatpush1.bf16.msra.mxu0 %v404
    %564 = vmatprep.mubr.bf16.mxu0 %v84
    %565 = vmatmul.mubr.bf16.gmra.mrb[0].mxu0 %v83
    %v566 = vpop.f32.mrb[0].mxu0
    %v567 = vadd.f32 %v482, %v566
    %v568 = vpop.f32.mrb[0].mxu0
    %v569 = vadd.f32 %v486, %v568
    %v570 = vpop.f32.mrb[0].mxu0
    %v571 = vpop.f32.mrb[0].mxu0
    %572 = vdwg.mxu0
    %v573 = vxor.u32 %v526, 2147483648
    %v574 = vmul.f32 %v573, 1.442695
    %v575 = vpow.pop %v574
    %v576 = vadd.f32 %v575, 1.0
    %v577 = vrcp.pop %v576
    %v578 = vmul.f32 1.0, %v577
    %v579 = vxor.u32 %v528, 2147483648
    %v580 = vmul.f32 %v579, 1.442695
    %v581 = vpow.pop %v580
    %v582 = vadd.f32 %v581, 1.0
    %v583 = vrcp.pop %v582
    %v584 = vmul.f32 1.0, %v583
    %v585 = vtanh.pop %v567
    %v586 = vxor.u32 %v569, 2147483648
    %v587 = vmul.f32 %v586, 1.442695
    %v588 = vpow.pop %v587
    %v589 = vadd.f32 %v588, 1.0
    %v590 = vrcp.pop %v589
    %v591 = vmul.f32 1.0, %v590
    %v592 = vmul.f32 %v584, %v82
    %v593 = vmul.f32 %v578, %v585
    %v594 = vadd.f32 %v592, %v593
    %v595 = vtanh.pop %v594
    %v596 = vmul.f32 %v591, %v595
    %v597 = vpack.c.bf16 %v596, %v596
    %v598 = vld [vmem:[#allocation9] sm:$0xff]
    %v599 = vld [vmem:[#allocation9 + $0x8] sm:$0xff]
    %v600 = vld [vmem:[#allocation9 + $0x10] sm:$0xff]
    %v601 = vld [vmem:[#allocation9 + $0x18] sm:$0xff]
    %v602 = vld [vmem:[#allocation9 + $0x20] sm:$0xff]
    %v603 = vld [vmem:[#allocation9 + $0x28] sm:$0xff]
    %v604 = vld [vmem:[#allocation9 + $0x30] sm:$0xff]
    %v605 = vld [vmem:[#allocation9 + $0x38] sm:$0xff]
    %v606 = vld [vmem:[#allocation9 + $0x40] sm:$0xff]
    %v607 = vld [vmem:[#allocation9 + $0x48] sm:$0xff]
    %v608 = vld [vmem:[#allocation9 + $0x50] sm:$0xff]
    %v609 = vld [vmem:[#allocation9 + $0x58] sm:$0xff]
    %v610 = vld [vmem:[#allocation9 + $0x60] sm:$0xff]
    %v611 = vld [vmem:[#allocation9 + $0x68] sm:$0xff]
    %v612 = vld [vmem:[#allocation9 + $0x70] sm:$0xff]
    %v613 = vld [vmem:[#allocation9 + $0x78] sm:$0xff]
    %v614 = vld [vmem:[%s6] sm:$0x3]
    %v631 = vunpack.c.l.b16 %v598
    %v632 = vunpack.c.h.b16 %v598
    %v633 = vunpack.c.l.b16 %v599
    %v634 = vunpack.c.h.b16 %v599
    %v635 = vunpack.c.l.b16 %v600
    %v636 = vunpack.c.h.b16 %v600
    %v637 = vunpack.c.l.b16 %v601
    %v638 = vunpack.c.h.b16 %v601
    %v639 = vunpack.c.l.b16 %v602
    %v640 = vunpack.c.h.b16 %v602
    %v641 = vunpack.c.l.b16 %v603
    %v642 = vunpack.c.h.b16 %v603
    %v643 = vunpack.c.l.b16 %v604
    %v644 = vunpack.c.h.b16 %v604
    %v645 = vunpack.c.l.b16 %v605
    %v646 = vunpack.c.h.b16 %v605
    %v647 = vunpack.c.l.b16 %v606
    %v648 = vunpack.c.h.b16 %v606
    %v649 = vunpack.c.l.b16 %v607
    %v650 = vunpack.c.h.b16 %v607
    %v651 = vunpack.c.l.b16 %v608
    %v652 = vunpack.c.h.b16 %v608
    %v653 = vunpack.c.l.b16 %v609
    %v654 = vunpack.c.h.b16 %v609
    %v655 = vunpack.c.l.b16 %v610
    %v656 = vunpack.c.h.b16 %v610
    %v657 = vunpack.c.l.b16 %v611
    %v658 = vunpack.c.h.b16 %v611
    %v659 = vunpack.c.l.b16 %v612
    %v660 = vunpack.c.h.b16 %v612
    %v661 = vunpack.c.l.b16 %v613
    %v662 = vunpack.c.h.b16 %v613
    %v663 = vpack.c.b16 %v633, %v631
    %v664 = vpack.c.b16 %v634, %v632
    %v665 = vpack.c.b16 %v637, %v635
    %v666 = vpack.c.b16 %v638, %v636
    %v667 = vpack.c.b16 %v641, %v639
    %v668 = vpack.c.b16 %v642, %v640
    %v669 = vpack.c.b16 %v645, %v643
    %v670 = vpack.c.b16 %v646, %v644
    %v671 = vpack.c.b16 %v649, %v647
    %v672 = vpack.c.b16 %v650, %v648
    %v673 = vpack.c.b16 %v653, %v651
    %v674 = vpack.c.b16 %v654, %v652
    %v675 = vpack.c.b16 %v657, %v655
    %v676 = vpack.c.b16 %v658, %v656
    %v677 = vpack.c.b16 %v661, %v659
    %v678 = vpack.c.b16 %v662, %v660
    %v696 = vlaneseq
    %v697 = vshrl.u32 %v696, 7
    %v698 = vsub.s32 0, %v697
    %v699 = vrot.slane %v614, %v698
    %v700 = vlaneseq
    %v701 = vshrl.u32 %v700, 7
    %v702 = vsub.s32 1, %v701
    %v703 = vrot.slane %v614, %v702
    %706 = vmatprep.subr.bf16.mxu0 %v664
    %707 = vmatpush1.bf16.msra.mxu0 %v663
    %708 = vmatprep.subr.bf16.mxu0 %v666
    %709 = vmatpush1.bf16.msra.mxu0 %v665
    %710 = vmatprep.subr.bf16.mxu0 %v668
    %711 = vmatpush1.bf16.msra.mxu0 %v667
    %712 = vmatprep.subr.bf16.mxu0 %v670
    %713 = vmatpush1.bf16.msra.mxu0 %v669
    %714 = vmatprep.subr.bf16.mxu0 %v672
    %715 = vmatpush1.bf16.msra.mxu0 %v671
    %716 = vmatprep.subr.bf16.mxu0 %v674
    %717 = vmatpush1.bf16.msra.mxu0 %v673
    %718 = vmatprep.subr.bf16.mxu0 %v676
    %719 = vmatpush1.bf16.msra.mxu0 %v675
    %720 = vmatprep.subr.bf16.mxu0 %v678
    %721 = vmatpush1.bf16.msra.mxu0 %v677
    %722 = vmatprep.subr.bf16.mxu0 0
    %723 = vmatpush1.bf16.msra.mxu0 0
    %724 = vmatprep.subr.bf16.mxu0 0
    %725 = vmatpush1.bf16.msra.mxu0 0
    %726 = vmatprep.subr.bf16.mxu0 0
    %727 = vmatpush1.bf16.msra.mxu0 0
    %728 = vmatprep.subr.bf16.mxu0 0
    %729 = vmatpush1.bf16.msra.mxu0 0
    %730 = vmatprep.subr.bf16.mxu0 0
    %731 = vmatpush1.bf16.msra.mxu0 0
    %732 = vmatprep.subr.bf16.mxu0 0
    %733 = vmatpush1.bf16.msra.mxu0 0
    %734 = vmatprep.subr.bf16.mxu0 0
    %735 = vmatpush1.bf16.msra.mxu0 0
    %736 = vmatprep.subr.bf16.mxu0 0
    %737 = vmatpush1.bf16.msra.mxu0 0
    %738 = vmatprep.mubr.bf16.mxu0 0
    %739 = vmatmul.mubr.bf16.gmra.mrb[0].mxu0 %v597
    %v740 = vpop.f32.mrb[0].mxu0
    %v741 = vadd.f32 %v699, %v740
    %v742 = vpop.f32.mrb[0].mxu0
    %v743 = vadd.f32 %v703, %v742
    %v744 = vpop.f32.mrb[0].mxu0
    %v745 = vpop.f32.mrb[0].mxu0
    %746 = vdwg.mxu0
    %vm747 = vcmask 1040384
    %v748 = vsel %vm747, %v741, -inf
    %v749 = vsel %vm747, %v743, -inf
    %v750 = vmax.f32 %v748, %v749
    %751 = vmax.xlane.f32.xlu0 %v750
    %v752 = vpop.xlane.xlu0 %751
    %v753 = vsub.f32 %v741, %v752
    %v754 = vsub.f32 %v743, %v752
    %v755 = vmul.f32 %v753, 1.442695
    %v756 = vpow.pop %v755
    %v757 = vmul.f32 %v754, 1.442695
    %v758 = vpow.pop %v757
    %v759 = vsel %vm747, %v756, 0.0
    %v760 = vsel %vm747, %v758, 0.0
    %v761 = vadd.f32 %v759, %v760
    %762 = vadd.xlane.f32.xlu0 %v761
    %v763 = vpop.xlane.xlu0 %762
    %v764 = vlog2.pop %v763
    %v765 = vmul.f32 %v764, 0.6931472
    %v766 = vsub.f32 %v753, %v765
    %v767 = vsub.f32 %v754, %v765
    %v770 = vcombine.low %v766, %v767
    %v772 = vunpack.c.l.s4 1966171168
    %v773 = vunpack.c.0.s8 %v772
    %v774 = vlaneseq
    %v775 = vshrl.u32 %v774, 7
    %v776 = vsub.s32 %v773, %v775
    %v777 = vrot.slane %v770, %v776
    %v779 = vunpack.c.l.s4 1966171168
    %v780 = vunpack.c.0.s8 %v779
    %v781 = vlaneseq
    %v782 = vshrl.u32 %v781, 7
    %v783 = vsub.s32 %v780, %v782
    %v784 = vrot.slane %v777, %v783
    %s786 = smul.u32 0, 2
    %s787 = scalar_lea.vmem [#allocation10], %s786
    %v788 = vlaneseq
    %vm789 = vcmp.ge.s32.totalorder %v788, 0
    %vm790 = vcmp.lt.s32.totalorder %v788, 256
    %vm791 = vmand %vm789, %vm790
    %792 = vst.msk [vmem:[%s787] sm:$0x3] %vm791, %v784
    %793 = vst [vmem:[#allocation11] sm:$0x1] %v596
    %794 = vst [vmem:[#allocation11 + $0x1] sm:$0x1] %v594
    // Predicated region
    $region42: #{_decode.1} parent=1 // pred_check
      _
    $region43: #{_decode.1} parent=1 // pred_check_branch
      %796 = sbr.rel (0) target = $region45
    $region44: #{_decode.1} parent=1 // pred_region
      %s798 = ssub.s32 32, 32
      %799 = vsyncadd [#allocation6], %s798
      %s801 = sshll.u32 [#allocation10], 4
      %s802 = int_to_ptr.vmem [resolvable:$true] %s801
      %804 = dma.vmem_to_hbm [thread:$0]  %s802, 32, %s7, [#allocation6]
    $region45: #{_decode.1} parent=1 // pred_fallthru
      _
    // Predicated region
    $region46: #{_decode.1} parent=1 // pred_check
      _
    $region47: #{_decode.1} parent=1 // pred_check_branch
      %806 = sbr.rel (0) target = $region49
    $region48: #{_decode.1} parent=1 // pred_region
      %s808 = ssub.s32 32, 32
      %809 = vsyncadd [#allocation12], %s808
      %s811 = sshll.u32 [#allocation11], 4
      %s812 = int_to_ptr.vmem [resolvable:$true] %s811
      %814 = dma.vmem_to_hbm [thread:$0]  %s812, 32, %s8, [#allocation12]
    $region49: #{_decode.1} parent=1 // pred_fallthru
      _
    // Predicated region
    $region50: #{_decode.1} parent=1 // pred_check
      _
    $region51: #{_decode.1} parent=1 // pred_check_branch
      %816 = sbr.rel (0) target = $region53
    $region52: #{_decode.1} parent=1 // pred_region
      %817 = dma.done [#allocation6], 32
    $region53: #{_decode.1} parent=1 // pred_fallthru
      _
    // Predicated region
    $region54: #{_decode.1} parent=1 // pred_check
      _
    $region55: #{_decode.1} parent=1 // pred_check_branch
      %819 = sbr.rel (0) target = $region57
    $region56: #{_decode.1} parent=1 // pred_region
      %820 = dma.done [#allocation12], 32
    $region57: #{_decode.1} parent=1 // pred_fallthru
      _
    %821 = vsyncpa [#allocation5], 1
    %822 = vsyncpa [#allocation8], 1
    %823 = vsyncpa [#allocation6], 1
    %824 = vsyncpa [#allocation12], 1

</llo_original>
